<compile_context>
chip_gen: v6e
topology: v6e:2x2x1
jax: 0.10.0
libtpu: 0.0.40
codegen_flags: <defaults>
</compile_context>

<pallas_src>
import math

import jax
import jax.numpy as jnp
from jax.experimental import pallas as pl
from jax.experimental.pallas import tpu as pltpu


def _round_up(n, m):
    return (n + m - 1) // m * m


def _cdiv(a, b):
    return (a + b - 1) // b


def _default_tile_bytes():
    """Generation-aware x-tile size (bytes of x per grid step)."""
    try:
        vmem = int(pltpu.get_tpu_info().vmem_capacity_bytes)
    except Exception:
        return 2 << 20
    # v7x: 64 MiB VMEM/TC but ~3.2 TB/s HBM -> bigger tiles to amortize the
    # ~0.35 us per-step overhead.  v5e/v6e (128 MiB VMEM) are already near the
    # HBM roofline at ~2 MiB tiles.
    return (4 << 20) if vmem <= (64 << 20) else (2 << 20)


def _pe_kernel_factory(k):
    """Kernel for one row-tile.

    w_ref     : VMEM (k, L)   -- row j: freq/positions.max() on lane group j, 0 elsewhere
    phase_ref : VMEM (1, L)   -- 0 on even features, pi/2 on odd features (tiled k times)
    pos_ref   : VMEM (Rt, k)  -- k original rows' positions per super-row
    x_ref     : VMEM (Rt, L)  -- k original rows folded into the lane axis
    o_ref     : VMEM (Rt, L)
    """

    def kernel(w_ref, phase_ref, pos_ref, x_ref, o_ref):
        pos = pos_ref[...]                                   # (Rt, k) f32
        w = w_ref[...]                                       # (k, L)  f32
        # Exact f32 expansion of positions to lanes: at most one term is
        # non-zero per lane, so the sum is exact.  ~2k VALU ops per element
        # (sin alone is ~30), and it stays precise (no MXU bf16 truncation).
        angle = phase_ref[...] + pos[:, 0:1] * w[0:1, :]     # (Rt, L)
        for j in range(1, k):
            angle = angle + pos[:, j:j + 1] * w[j:j + 1, :]
        pe = jnp.sin(angle)                                  # sin even / cos odd lanes
        # Add in x's own dtype (packed bf16 add on v6e/v7x; exact for f32).
        o_ref[...] = x_ref[...] + pe.astype(o_ref.dtype)

    return kernel


def positional_encoding(x, positions, *, target_tile_bytes=None):
    """x: (S, B, D), positions: (S, B) -> (S, B, D) with sinusoidal PE added."""
    S, B, D = x.shape
    assert D % 2 == 0, "d_model must be even (matches the PyTorch reference)"
    total_rows = S * B
    itemsize = jnp.dtype(x.dtype).itemsize

    # ---- fold rows into lanes so blocks are lane-dense (multiple of 128) -----
    k = 128 // math.gcd(D, 128)
    if k > 16 or total_rows % k != 0:
        k = 1          # fallback: still correct (stores may be lane-masked)
    L = k * D
    num_super = total_rows // k

    # ---- per-lane constants, hoisted out of the kernel ------------------------
    pos_max = jnp.max(positions).astype(jnp.float32)   # unguarded, like the reference
    half = jnp.exp(jnp.arange(0, D, 2, dtype=jnp.float32)
                   * (-math.log(10000.0) / D))                      # (D/2,)
    freq_scaled = jnp.repeat(half, 2) / pos_max                     # (D,) freq / max
    phase_base = jnp.tile(jnp.array([0.0, math.pi / 2.0], jnp.float32), D // 2)
    # W[j, j*D + d] = freq_scaled[d]  (masked per-lane-group frequency rows)
    w = (jnp.eye(k, dtype=jnp.float32)[:, :, None]
         * freq_scaled[None, None, :]).reshape(k, L)
    phase = jnp.tile(phase_base, k).reshape(1, L)

    # ---- collapse (S, B) into dense rows; fold k rows per lane-dense super-row
    # (contiguous reshapes -> no extra HBM passes)
    x2 = x.reshape(num_super, L)
    p2 = positions.astype(jnp.float32).reshape(num_super, k)

    # ---- tile sizing -----------------------------------------------------------
    if target_tile_bytes is None:
        target_tile_bytes = _default_tile_bytes()
    row_bytes = max(1, L * itemsize)
    rows_by_bytes = max(8, (target_tile_bytes // row_bytes) // 8 * 8)
    # Aim for >=4 grid steps on medium inputs (v7x: 2 TensorCores share the
    # "parallel" axis), but never shrink tiles more than 4x below the bytes cap.
    rows_split = max(8, _round_up(_cdiv(num_super, 4), 8))
    rows_target = min(rows_by_bytes, max(rows_split, rows_by_bytes // 4))
    rows_target = max(8, rows_target // 8 * 8)

    if num_super <= rows_target:
        rows_tile = num_super                      # single full-extent block
    else:
        rows_tile = None
        r = rows_target
        while r >= max(8, rows_target - 256):      # short exact-divisor search
            if num_super % r == 0:
                rows_tile = r
                break
            r -= 8
        if rows_tile is None:
            rows_tile = rows_target                # non-dividing: Pallas handles the tail block
    grid = (_cdiv(num_super, rows_tile),)

    # ---- explicit VMEM budget (double-buffered x / out / positions + consts) --
    rows_pad = _round_up(rows_tile, 8)
    lanes_x = _round_up(L, 128)
    x_tile_b = rows_pad * lanes_x * itemsize
    pos_tile_b = rows_pad * 128 * 4                # (Rt, k<128) lane-pads to 128 in VMEM
    const_b = (_round_up(k, 8) + 8) * lanes_x * 4
    vmem_need = 2 * (2 * x_tile_b + pos_tile_b + const_b)
    vmem_limit = int(min(64 << 20, max(16 << 20, 1.5 * vmem_need + (1 << 20))))

    out2 = pl.pallas_call(
        _pe_kernel_factory(k),
        out_shape=jax.ShapeDtypeStruct((num_super, L), x.dtype),
        grid=grid,
        in_specs=[
            pl.BlockSpec((k, L), lambda i: (0, 0)),           # W (resident)
            pl.BlockSpec((1, L), lambda i: (0, 0)),           # phase (resident)
            pl.BlockSpec((rows_tile, k), lambda i: (i, 0)),   # positions
            pl.BlockSpec((rows_tile, L), lambda i: (i, 0)),   # x
        ],
        out_specs=pl.BlockSpec((rows_tile, L), lambda i: (i, 0)),
        compiler_params=pltpu.CompilerParams(
            dimension_semantics=("parallel",),
            vmem_limit_bytes=vmem_limit),
    )(w, phase, p2, x2)

    return out2.reshape(S, B, D)


def _reference(x, positions):
    """Pure-JAX reference mirroring the PyTorch forward (eval-mode dropout)."""
    S, B, D = x.shape
    pos_norm = (positions / jnp.max(positions))[:, :, None]
    div_term = jnp.exp(jnp.arange(0, D, 2, dtype=jnp.float32)
                       * (-math.log(10000.0) / D))
    pe = jnp.zeros_like(x)
    pe = pe.at[:, :, 0::2].set(jnp.sin(pos_norm * div_term))
    pe = pe.at[:, :, 1::2].set(jnp.cos(pos_norm * div_term))
    return x + pe


if __name__ == "__main__":
    key = jax.random.PRNGKey(0)

    def run_case(S, B, D, tag, **kw):
        kx, kp = jax.random.split(jax.random.fold_in(key, tag))
        x = jax.random.normal(kx, (S, B, D), dtype=jnp.float32)
        # m/z-like positive positions
        positions = jax.random.uniform(kp, (S, B), dtype=jnp.float32,
                                       minval=50.0, maxval=2000.0)
        out = jax.block_until_ready(positional_encoding(x, positions, **kw))
        ref = _reference(x, positions)
        assert out.shape == x.shape and out.dtype == x.dtype
        assert jnp.allclose(out, ref, atol=1e-5, rtol=1e-5), (S, B, D)

    # Primary small shape from the module: (seq=8, batch=2, d_model=32); k=4 fold.
    run_case(8, 2, 32, 0)
    # Multi-step grid with an exact divisor tile (tiny tiles to force >1 step).
    run_case(128, 4, 32, 1, target_tile_bytes=64 << 10)
    # Row count not divisible by the tile -> cdiv grid with a clipped tail block.
    run_case(100, 5, 32, 2, target_tile_bytes=64 << 10)
    # d_model already a multiple of 128 -> k == 1 (no folding) path.
    run_case(8, 2, 256, 3)

    print("KERNEL_OK")
</pallas_src>

<mosaic_0001>
module attributes {stable_mosaic.version = 11 : i64} {
  func.func @kernel(%arg0: i32, %arg1: memref<4x128xf32, #tpu.memory_space<vmem>>, %arg2: memref<1x128xf32, #tpu.memory_space<vmem>>, %arg3: memref<4x4xf32, #tpu.memory_space<vmem>>, %arg4: memref<4x128xf32, #tpu.memory_space<vmem>>, %arg5: memref<4x128xf32, #tpu.memory_space<vmem>>) attributes {dimension_semantics = [#tpu.dimension_semantics<parallel>], iteration_bounds = array<i64: 1>, scalar_prefetch = 0 : i64, scratch_operands = 0 : i64, tpu.core_type = #tpu.core_type<tc>, window_params = [{pipeline_mode = #tpu.pipeline_mode<synchronous>, transform_indices = @transform_0, window_bounds = array<i64: 4, 128>}, {pipeline_mode = #tpu.pipeline_mode<synchronous>, transform_indices = @transform_1, window_bounds = array<i64: 1, 128>}, {transform_indices = @transform_2, window_bounds = array<i64: 4, 4>}, {transform_indices = @transform_3, window_bounds = array<i64: 4, 128>}, {transform_indices = @transform_4, window_bounds = array<i64: 4, 128>}]} {
    %c0 = arith.constant 0 : index
    %c0_0 = arith.constant 0 : index
    %0 = vector.load %arg3[%c0, %c0_0] : memref<4x4xf32, #tpu.memory_space<vmem>>, vector<4x4xf32>
    %c0_1 = arith.constant 0 : index
    %c0_2 = arith.constant 0 : index
    %1 = vector.load %arg1[%c0_1, %c0_2] : memref<4x128xf32, #tpu.memory_space<vmem>>, vector<4x128xf32>
    %c0_3 = arith.constant 0 : index
    %c0_4 = arith.constant 0 : index
    %2 = vector.load %arg2[%c0_3, %c0_4] : memref<1x128xf32, #tpu.memory_space<vmem>>, vector<1x128xf32>
    %3 = vector.extract_strided_slice %0 {offsets = [0, 0], sizes = [4, 1], strides = [1, 1]} : vector<4x4xf32> to vector<4x1xf32>
    %4 = vector.extract_strided_slice %1 {offsets = [0, 0], sizes = [1, 128], strides = [1, 1]} : vector<4x128xf32> to vector<1x128xf32>
    %5 = vector.broadcast %3 : vector<4x1xf32> to vector<4x128xf32>
    %6 = vector.broadcast %4 : vector<1x128xf32> to vector<4x128xf32>
    %7 = arith.mulf %5, %6 : vector<4x128xf32>
    %8 = vector.broadcast %2 : vector<1x128xf32> to vector<4x128xf32>
    %9 = arith.addf %8, %7 : vector<4x128xf32>
    %10 = vector.extract_strided_slice %0 {offsets = [0, 1], sizes = [4, 1], strides = [1, 1]} : vector<4x4xf32> to vector<4x1xf32>
    %11 = vector.extract_strided_slice %1 {offsets = [1, 0], sizes = [1, 128], strides = [1, 1]} : vector<4x128xf32> to vector<1x128xf32>
    %12 = vector.broadcast %10 : vector<4x1xf32> to vector<4x128xf32>
    %13 = vector.broadcast %11 : vector<1x128xf32> to vector<4x128xf32>
    %14 = arith.mulf %12, %13 : vector<4x128xf32>
    %15 = arith.addf %9, %14 : vector<4x128xf32>
    %16 = vector.extract_strided_slice %0 {offsets = [0, 2], sizes = [4, 1], strides = [1, 1]} : vector<4x4xf32> to vector<4x1xf32>
    %17 = vector.extract_strided_slice %1 {offsets = [2, 0], sizes = [1, 128], strides = [1, 1]} : vector<4x128xf32> to vector<1x128xf32>
    %18 = vector.broadcast %16 : vector<4x1xf32> to vector<4x128xf32>
    %19 = vector.broadcast %17 : vector<1x128xf32> to vector<4x128xf32>
    %20 = arith.mulf %18, %19 : vector<4x128xf32>
    %21 = arith.addf %15, %20 : vector<4x128xf32>
    %22 = vector.extract_strided_slice %0 {offsets = [0, 3], sizes = [4, 1], strides = [1, 1]} : vector<4x4xf32> to vector<4x1xf32>
    %23 = vector.extract_strided_slice %1 {offsets = [3, 0], sizes = [1, 128], strides = [1, 1]} : vector<4x128xf32> to vector<1x128xf32>
    %24 = vector.broadcast %22 : vector<4x1xf32> to vector<4x128xf32>
    %25 = vector.broadcast %23 : vector<1x128xf32> to vector<4x128xf32>
    %26 = arith.mulf %24, %25 : vector<4x128xf32>
    %27 = arith.addf %21, %26 : vector<4x128xf32>
    %28 = math.sin %27 : vector<4x128xf32>
    %c0_5 = arith.constant 0 : index
    %c0_6 = arith.constant 0 : index
    %29 = vector.load %arg4[%c0_5, %c0_6] : memref<4x128xf32, #tpu.memory_space<vmem>>, vector<4x128xf32>
    %30 = arith.addf %29, %28 : vector<4x128xf32>
    %c0_7 = arith.constant 0 : index
    %c0_8 = arith.constant 0 : index
    %31 = vector.load %arg5[%c0_7, %c0_8] : memref<4x128xf32, #tpu.memory_space<vmem>>, vector<4x128xf32>
    tpu.vector_store %arg5[%c0_7, %c0_8], %30 {strides = array<i32>} : memref<4x128xf32, #tpu.memory_space<vmem>>, vector<4x128xf32>,
    return
  }
  func.func @transform_0(%arg0: i32) -> (i32, i32) {
    %c0_i32 = arith.constant 0 : i32
    %c0_i32_0 = arith.constant 0 : i32
    %c0_i32_1 = arith.constant 0 : i32
    return %c0_i32, %c0_i32_0 : i32, i32
  }
  func.func @transform_1(%arg0: i32) -> (i32, i32) {
    %c0_i32 = arith.constant 0 : i32
    %c0_i32_0 = arith.constant 0 : i32
    %c0_i32_1 = arith.constant 0 : i32
    return %c0_i32, %c0_i32_0 : i32, i32
  }
  func.func @transform_2(%arg0: i32) -> (i32, i32) {
    %c0_i32 = arith.constant 0 : i32
    %c0_i32_0 = arith.constant 0 : i32
    return %arg0, %c0_i32 : i32, i32
  }
  func.func @transform_3(%arg0: i32) -> (i32, i32) {
    %c0_i32 = arith.constant 0 : i32
    %c0_i32_0 = arith.constant 0 : i32
    return %arg0, %c0_i32 : i32, i32
  }
  func.func @transform_4(%arg0: i32) -> (i32, i32) {
    %c0_i32 = arith.constant 0 : i32
    %c0_i32_0 = arith.constant 0 : i32
    return %arg0, %c0_i32 : i32, i32
  }
}

</mosaic_0001>

<llo_original>
// kernel: tpu_custom_call.1
$region0: #{tpu_custom_call.1}
  #allocation0 [shape = 'u32[]', space=smem, size = 0x4, offset = 0x4, fixed_abs, tag = 'smem constant byte address 0x4 - core index']
  #allocation1 [shape = 'u32[144,128]{1,0:T(1,128)}', space=vmem, size = 0x12000, scoped, tag = 'internal scratch']
  %s0 = inlined_call_operand.hbm [shape: f32[4,128], index: 0, kind: input, shape index: {}]
  %s1 = inlined_call_operand.vmem [shape: f32[1,128], index: 1, kind: input, shape index: {}]
  %s2 = inlined_call_operand.hbm [shape: f32[4,4], index: 2, kind: input, shape index: {}]
  %s3 = inlined_call_operand.vmem [shape: f32[4,128], index: 3, kind: input, shape index: {}]
  %s4 = inlined_call_operand.hbm [shape: f32[4,128], index: 4, kind: output, shape index: {}]
  %s5 = sld [smem:[#allocation0]]
  $region34: #{tpu_custom_call.1} parent=0
    _
  %s7 = ssub.s32 1, %s5
  %s8 = scalar_select 0, %s7, %s5
  $region1: #{tpu_custom_call.1} parent=0
    #allocation2 [shape = 'u8[2048]{0}', space=vmem, size = 0x800, scoped, tag = 'input window, operand 0, single buffered']
    #allocation3 [shape = 's32[1]{0}', space=sflag, size = 0x4, scoped, tag = 'scoped memory for tpu_custom_call.1']
    #allocation4 [shape = 's32[1]{0}', space=sflag, size = 0x4, scoped, tag = 'scoped memory for tpu_custom_call.1']
    #allocation5 [shape = 'u8[2048]{0}', space=vmem, size = 0x800, scoped, tag = 'input window, operand 2, single buffered']
    #allocation6 [shape = 's32[1]{0}', space=sflag, size = 0x4, scoped, tag = 'scoped memory for tpu_custom_call.1']
    #allocation7 [shape = 'u8[2048]{0}', space=vmem, size = 0x800, scoped, tag = 'output window, operand 0, single buffered']
    %9 = vsyncpa [#allocation3], 0
    %10 = vsyncpa [#allocation6], 0
    %11 = vsyncpa [#allocation4], 0
    // Predicated region
    $region2: #{tpu_custom_call.1} parent=1 // pred_check
      _
    $region3: #{tpu_custom_call.1} parent=1 // pred_check_branch
      %13 = sbr.rel (0) target = $region5
    $region4: #{tpu_custom_call.1} parent=1 // pred_region
      %s15 = ssub.s32 64, 64
      %16 = vsyncadd [#allocation3], %s15
      %s18 = sshll.u32 [#allocation2], 4
      %s19 = int_to_ptr.vmem [resolvable:$true] %s18
      %21 = dma.hbm_to_vmem [thread:$0]  %s0, 64, %s19, [#allocation3]
    $region5: #{tpu_custom_call.1} parent=1 // pred_fallthru
      _
    // Predicated region
    $region6: #{tpu_custom_call.1} parent=1 // pred_check
      _
    $region7: #{tpu_custom_call.1} parent=1 // pred_check_branch
      %23 = sbr.rel (0) target = $region9
    $region8: #{tpu_custom_call.1} parent=1 // pred_region
      _
    $region9: #{tpu_custom_call.1} parent=1 // pred_fallthru
      _
    // Predicated region
    $region10: #{tpu_custom_call.1} parent=1 // pred_check
      _
    $region11: #{tpu_custom_call.1} parent=1 // pred_check_branch
      %25 = sbr.rel (0) target = $region13
    $region12: #{tpu_custom_call.1} parent=1 // pred_region
      %s27 = ssub.s32 64, 64
      %28 = vsyncadd [#allocation6], %s27
      %s30 = sshll.u32 [#allocation5], 4
      %s31 = int_to_ptr.vmem [resolvable:$true] %s30
      %33 = dma.hbm_to_vmem [thread:$0]  %s2, 64, %s31, [#allocation6]
    $region13: #{tpu_custom_call.1} parent=1 // pred_fallthru
      _
    // Predicated region
    $region14: #{tpu_custom_call.1} parent=1 // pred_check
      _
    $region15: #{tpu_custom_call.1} parent=1 // pred_check_branch
      %35 = sbr.rel (0) target = $region17
    $region16: #{tpu_custom_call.1} parent=1 // pred_region
      _
    $region17: #{tpu_custom_call.1} parent=1 // pred_fallthru
      _
    // Predicated region
    $region18: #{tpu_custom_call.1} parent=1 // pred_check
      _
    $region19: #{tpu_custom_call.1} parent=1 // pred_check_branch
      %37 = sbr.rel (0) target = $region21
    $region20: #{tpu_custom_call.1} parent=1 // pred_region
      %38 = dma.done [#allocation3], 64
    $region21: #{tpu_custom_call.1} parent=1 // pred_fallthru
      _
    // Predicated region
    $region22: #{tpu_custom_call.1} parent=1 // pred_check
      _
    $region23: #{tpu_custom_call.1} parent=1 // pred_check_branch
      %40 = sbr.rel (0) target = $region25
    $region24: #{tpu_custom_call.1} parent=1 // pred_region
      %41 = dma.done [#allocation6], 64
    $region25: #{tpu_custom_call.1} parent=1 // pred_fallthru
      _
    %v42 = vld [vmem:[#allocation5] sm:$0xf]
    %v43 = vld [vmem:[#allocation2] sm:$0xf]
    %v44 = vld [vmem:[%s1] sm:$0x1]
    %46 = vset.pattern.permute.xlu0 0
    %47 = vperm.xlu0 %46, %v42
    %v48 = vpop.permute.xlu0 %47
    %v50 = vlaneseq
    %v51 = vshrl.u32 %v50, 7
    %v52 = vsub.s32 0, %v51
    %v53 = vrot.slane %v43, %v52
    %v54 = vmul.f32 %v48, %v53
    %v56 = vlaneseq
    %v57 = vshrl.u32 %v56, 7
    %v58 = vsub.s32 0, %v57
    %v59 = vrot.slane %v44, %v58
    %v61 = vadd.f32 %v59, %v54
    %62 = vset.pattern.permute.xlu0 1
    %63 = vperm.xlu0 %62, %v42
    %v64 = vpop.permute.xlu0 %63
    %v66 = vlaneseq
    %v67 = vshrl.u32 %v66, 7
    %v68 = vsub.s32 1, %v67
    %v69 = vrot.slane %v43, %v68
    %v70 = vmul.f32 %v64, %v69
    %v71 = vadd.f32 %v61, %v70
    %72 = vset.pattern.permute.xlu0 2
    %73 = vperm.xlu0 %72, %v42
    %v74 = vpop.permute.xlu0 %73
    %v76 = vlaneseq
    %v77 = vshrl.u32 %v76, 7
    %v78 = vsub.s32 2, %v77
    %v79 = vrot.slane %v43, %v78
    %v80 = vmul.f32 %v74, %v79
    %v81 = vadd.f32 %v71, %v80
    %82 = vset.pattern.permute.xlu0 3
    %83 = vperm.xlu0 %82, %v42
    %v84 = vpop.permute.xlu0 %83
    %v86 = vlaneseq
    %v87 = vshrl.u32 %v86, 7
    %v88 = vsub.s32 3, %v87
    %v89 = vrot.slane %v43, %v88
    %v90 = vmul.f32 %v84, %v89
    %v91 = vadd.f32 %v81, %v90
    %v92 = vand.u32 2147483647, %v91
    %vm93 = vcmp.le.f32.partialorder %v92, 0.7853982
    %vm94 = vcmp.lt.s32.totalorder %v91, 0
    %v95 = vand.u32 %v91, 2139095040
    %v96 = vshrl.u32 %v95, 23
    %v97 = vsub.s32 %v96, 127
    %v98 = vand.u32 2147483647, %v91
    %v99 = vand.u32 %v98, 8388607
    %v100 = vor.u32 %v99, 8388608
    %v101 = vsub.s32 0, %v100
    %v102 = vadd.s32 %v97, 1
    %vm103 = vcmp.gt.s32.totalorder %v102, 0
    %v104 = vsel %vm103, %v102, 0
    %v105 = vshrl.u32 %v104, 5
    %v106 = vand.u32 %v104, 31
    %v107 = vsub.s32 32, %v106
    %v108 = vshrl.u32 683565275, %v107
    %v109 = vshll.u32 683565275, %v106
    %v110 = vshrl.u32 2475754826, %v107
    %v111 = vor.u32 %v109, %v110
    %v112 = vshll.u32 2475754826, %v106
    %v113 = vshrl.u32 2131351028, %v107
    %v114 = vor.u32 %v112, %v113
    %v115 = vshll.u32 2131351028, %v106
    %v116 = vshrl.u32 2102212464, %v107
    %v117 = vor.u32 %v115, %v116
    %v118 = vshll.u32 2102212464, %v106
    %v119 = vshrl.u32 920167782, %v107
    %v120 = vor.u32 %v118, %v119
    %v121 = vshll.u32 920167782, %v106
    %v122 = vshrl.u32 1326507024, %v107
    %v123 = vor.u32 %v121, %v122
    %vm124 = vcmp.lt.s32.totalorder %v105, 1
    %vm125 = vcmp.lt.s32.totalorder %v105, 2
    %vm126 = vcmp.lt.s32.totalorder %v105, 3
    %vm127 = vcmp.lt.s32.totalorder %v105, 4
    %v128 = vsel %vm124, %v108, %v111
    %v129 = vsel %vm127, %v117, 2102212464
    %v130 = vsel %vm126, %v114, %v129
    %v131 = vsel %vm125, %v128, %v130
    %v132 = vsel %vm124, %v111, %v114
    %v133 = vsel %vm127, %v120, 920167782
    %v134 = vsel %vm126, %v117, %v133
    %v135 = vsel %vm125, %v132, %v134
    %v136 = vsel %vm124, %v114, %v117
    %v137 = vsel %vm127, %v123, 1326507024
    %v138 = vsel %vm126, %v120, %v137
    %v139 = vsel %vm125, %v136, %v138
    %v140 = vshll.u32 %v100, 8
    %v141 = vmul.u32.u64.compose %v140, %v139
    %v142 = vextract.low.u32 %v141
    %v143 = vextract.high.u32 %v141
    %v144 = vmul.u32.u64.compose %v140, %v135
    %v145 = vextract.low.u32 %v144
    %v146 = vextract.high.u32 %v144
    %v147 = vmul.u32 %v140, %v131
    %v148 = vadd.s32 %v143, %v145
    %vm149 = vc.u32 %v143, %v145
    %v150 = vadd.s32 %v146, 1
    %v151 = vsel %vm149, %v150, %v146
    %v152 = vadd.s32 %v147, %v151
    %v153 = vadd.s32 %v152, 536870912
    %v154 = vshrl.u32 %v153, 30
    %v155 = vshll.u32 %v154, 30
    %v156 = vsub.s32 %v152, %v155
    %vm157 = vcmp.lt.s32.totalorder %v156, 0
    %v158 = vsub.s32 0, %v156
    %v159 = vsel %vm157, %v158, %v156
    %v160 = vclz %v159
    %v161 = vsub.s32 %v160, 2
    %vm162 = vcmp.gt.s32.totalorder 0, %v161
    %v163 = vsel %vm162, 0, %v161
    %v164 = vsub.s32 32, %v163
    %v165 = vshll.u32 %v156, %v163
    %v166 = vshrl.u32 %v148, %v164
    %v167 = vor.u32 %v165, %v166
    %v168 = vsub.s32 4294967266, %v163
    %v169 = vadd.s32 %v168, 127
    %v170 = vshll.u32 %v169, 23
    %v171 = vor.u32 4788187, %v170
    %v172 = vand.u32 2147483647, %v171
    %v174 = vcvt.s32.f32 %v167
    %v175 = vmul.f32 %v174, %v172
    %v176 = vxor.u32 %v175, 2147483648
    %v177 = vsel %vm94, %v176, %v175
    %v178 = vsub.s32 4, %v154
    %v179 = vsel %vm94, %v178, %v154
    %v180 = vsel %vm93, %v91, %v177
    %v181 = vsel %vm93, 0, %v179
    %v182 = vcosq.f32.pop %v180
    %v183 = vsinq.f32.pop %v180
    %vm184 = vweird.f32 %v91
    %v185 = vadd.s32 %v181, 3
    %v186 = vand.u32 %v185, 3
    %vm187 = vcmp.lt.s32.totalorder %v186, 2
    %vm188 = vcmp.eq.s32.totalorder %v186, 0
    %v189 = vxor.u32 %v183, 2147483648
    %v190 = vsel %vm188, %v182, %v189
    %vm191 = vcmp.eq.s32.totalorder %v186, 2
    %v192 = vxor.u32 %v182, 2147483648
    %v193 = vsel %vm191, %v192, %v183
    %v194 = vsel %vm187, %v190, %v193
    %v195 = vsel %vm184, nan, %v194
    %v196 = vld [vmem:[%s3] sm:$0xf]
    %v197 = vadd.f32 %v196, %v195
    %198 = vst [vmem:[#allocation7] sm:$0xf] %v197
    // Predicated region
    $region26: #{tpu_custom_call.1} parent=1 // pred_check
      _
    $region27: #{tpu_custom_call.1} parent=1 // pred_check_branch
      %200 = sbr.rel (0) target = $region29
    $region28: #{tpu_custom_call.1} parent=1 // pred_region
      %s202 = ssub.s32 64, 64
      %203 = vsyncadd [#allocation4], %s202
      %s205 = sshll.u32 [#allocation7], 4
      %s206 = int_to_ptr.vmem [resolvable:$true] %s205
      %208 = dma.vmem_to_hbm [thread:$0]  %s206, 64, %s4, [#allocation4]
    $region29: #{tpu_custom_call.1} parent=1 // pred_fallthru
      _
    // Predicated region
    $region30: #{tpu_custom_call.1} parent=1 // pred_check
      _
    $region31: #{tpu_custom_call.1} parent=1 // pred_check_branch
      %210 = sbr.rel (0) target = $region33
    $region32: #{tpu_custom_call.1} parent=1 // pred_region
      %211 = dma.done [#allocation4], 64
    $region33: #{tpu_custom_call.1} parent=1 // pred_fallthru
      _
    %212 = vsyncpa [#allocation3], 1
    %213 = vsyncpa [#allocation6], 1
    %214 = vsyncpa [#allocation4], 1

</llo_original>
